<compile_context>
chip_gen: v5e
topology: v5e:2x2
jax: 0.10.0
libtpu: 0.0.40
codegen_flags: <defaults>
</compile_context>

<pallas_src>
import numpy as np
import jax
import jax.numpy as jnp
from jax.experimental import pallas as pl
from jax.experimental.pallas import tpu as pltpu

TM_MAX = 2048   # electron-sample lane tile upper bound (multiple of 128)


def _round_up(x, m):
    return ((x + m - 1) // m) * m


def _choose_tm(m_rows):
    """Lane tile: as large as possible (amortize ~0.35us/step overhead) but
    keep >= 2 grid steps when there is enough work so both v7x TensorCores get
    a share of the 'parallel' axis."""
    mp = _round_up(max(m_rows, 1), 128)
    tm = min(TM_MAX, mp)
    if mp >= 2048:
        tm = min(tm, max(1024, _round_up(mp // 2, 128)))
    return tm


# ---------------------------------------------------------------------------
# Kernel builder: specialized at build time on the static exponent sets.
# ---------------------------------------------------------------------------
def _make_ao_kernel(used_n, used_kx, used_ky, used_kz,
                    col_n, col_kx, col_ky, col_kz):
    need_sqrt = any(k % 2 == 1 for k in used_n)

    def _r_powers(r2):
        """Powers of r needed by the radial part, built from r2 (sqrt emitted
        only if some shell has an odd principal exponent)."""
        cache = {2: r2}
        if need_sqrt:
            cache[1] = jnp.sqrt(r2)

        def get(k):
            if k not in cache:
                cache[k] = get(k - 2) * r2
            return cache[k]

        return {k: get(k) for k in used_n if k > 0}

    def _axis_powers(base, used):
        cache = {1: base}

        def get(k):
            if k not in cache:
                cache[k] = get(k - 1) * base
            return cache[k]

        return {k: get(k) for k in used if k > 0}

    def _masked_select(prm_ref, col0, used, pows):
        """sum_i mask_i * base**k_i  (mask columns are precomputed per-basis
        0/1 values, scale-folded for the radial masks)."""
        acc = None
        for i, k in enumerate(used):
            m = prm_ref[:, col0 + i:col0 + i + 1]          # (NBAS_P, 1)
            term = m if k == 0 else m * pows[k]
            acc = term if acc is None else acc + term
        return acc

    def ao_kernel(pos_ref, prm_ref, cmat_ref, ao_ref):
        # prm columns: 0:cx 1:cy 2:cz 3:(-alpha) then scale-folded bas_n
        # masks, then kx/ky/kz masks.
        cx = prm_ref[:, 0:1]              # (NBAS_P, 1)
        cy = prm_ref[:, 1:2]
        cz = prm_ref[:, 2:3]
        neg_alpha = prm_ref[:, 3:4]       # -alpha baked in at setup

        x = pos_ref[0:1, :] - cx          # (NBAS_P, TM)
        y = pos_ref[1:2, :] - cy
        z = pos_ref[2:3, :] - cz
        r2 = x * x + y * y + z * z

        # running product (short live ranges):
        #   scale * r**n  ->  * exp(-a r2)  ->  * x**kx  ->  * y**ky  -> * z**kz
        bas = _masked_select(prm_ref, col_n, used_n, _r_powers(r2))
        bas = bas * jnp.exp(neg_alpha * r2)
        bas = bas * _masked_select(prm_ref, col_kx, used_kx,
                                   _axis_powers(x, used_kx))
        bas = bas * _masked_select(prm_ref, col_ky, used_ky,
                                   _axis_powers(y, used_ky))
        bas = bas * _masked_select(prm_ref, col_kz, used_kz,
                                   _axis_powers(z, used_kz))

        # index_add_ contraction on the MXU: (NORB_P, NBAS_P) @ (NBAS_P, TM)
        ao_ref[...] = jnp.dot(cmat_ref[...], bas,
                              preferred_element_type=jnp.float32,
                              precision=jax.lax.Precision.HIGHEST)

    return ao_kernel


# ---------------------------------------------------------------------------
# One-time (per-molecule) setup: packs basis constants, returns jitted forward.
# ---------------------------------------------------------------------------
def build_atomic_orbitals_forward(atom_coords, nshells, bas_exp, bas_n,
                                  bas_kx, bas_ky, bas_kz, bas_coeffs,
                                  norm_cst, index_ctr, norb, nelec):
    bas_coords = np.repeat(np.asarray(atom_coords, np.float32),
                           np.asarray(nshells), axis=0)
    nbas = bas_coords.shape[0]
    # Basis primitives / orbitals on the sublane axis, padded to multiples of 8.
    # (Very large basis sets would want an extra grid axis over the basis; not
    #  needed at typical QMC sizes.)
    nbas_p = max(8, _round_up(nbas, 8))
    norb_p = max(8, _round_up(norb, 8))

    bas_n = np.asarray(bas_n, np.int64)
    bas_kx = np.asarray(bas_kx, np.int64)
    bas_ky = np.asarray(bas_ky, np.int64)
    bas_kz = np.asarray(bas_kz, np.int64)

    used_n = sorted(set(bas_n.tolist()))
    used_kx = sorted(set(bas_kx.tolist()))
    used_ky = sorted(set(bas_ky.tolist()))
    used_kz = sorted(set(bas_kz.tolist()))

    scale = (np.asarray(norm_cst, np.float32)
             * np.asarray(bas_coeffs, np.float32))

    ncol = 4 + len(used_n) + len(used_kx) + len(used_ky) + len(used_kz)
    prm = np.zeros((nbas_p, ncol), np.float32)
    prm[:nbas, 0] = bas_coords[:, 0]
    prm[:nbas, 1] = bas_coords[:, 1]
    prm[:nbas, 2] = bas_coords[:, 2]
    prm[:nbas, 3] = -np.asarray(bas_exp, np.float32)      # -alpha baked in

    col = 4
    col_n = col
    for k in used_n:                                       # scale folded here
        prm[:nbas, col] = (bas_n == k).astype(np.float32) * scale
        col += 1
    col_kx = col
    for k in used_kx:
        prm[:nbas, col] = (bas_kx == k).astype(np.float32)
        col += 1
    col_ky = col
    for k in used_ky:
        prm[:nbas, col] = (bas_ky == k).astype(np.float32)
        col += 1
    col_kz = col
    for k in used_kz:
        prm[:nbas, col] = (bas_kz == k).astype(np.float32)
        col += 1

    # one-hot contraction matrix (Norb_p, Nbas_p): cmat[index_ctr[i], i] = 1
    cmat = np.zeros((norb_p, nbas_p), np.float32)
    cmat[np.asarray(index_ctr), np.arange(nbas)] = 1.0

    prm_dev = jnp.asarray(prm)
    cmat_dev = jnp.asarray(cmat)

    kernel = _make_ao_kernel(used_n, used_kx, used_ky, used_kz,
                             col_n, col_kx, col_ky, col_kz)

    def _forward(pos, prm_arr, cmat_arr):
        nbatch = pos.shape[0]
        M = nbatch * nelec
        tm = _choose_tm(M)
        Mp = _round_up(M, tm)

        # electrons on the 128-lane axis: (3, Mp)
        pos_t = pos.reshape(M, 3).astype(jnp.float32).T
        pos_pad = jnp.pad(pos_t, ((0, 0), (0, Mp - M)))

        ao_pad = pl.pallas_call(
            kernel,
            out_shape=jax.ShapeDtypeStruct((norb_p, Mp), jnp.float32),
            grid_spec=pltpu.PrefetchScalarGridSpec(
                num_scalar_prefetch=0,
                grid=(Mp // tm,),
                in_specs=[
                    pl.BlockSpec((3, tm), lambda i: (0, i)),
                    pl.BlockSpec((nbas_p, ncol), lambda i: (0, 0)),
                    pl.BlockSpec((norb_p, nbas_p), lambda i: (0, 0)),
                ],
                out_specs=pl.BlockSpec((norb_p, tm), lambda i: (0, i)),
            ),
            compiler_params=pltpu.CompilerParams(
                dimension_semantics=("parallel",),
                vmem_limit_bytes=32 * 1024 * 1024),
        )(pos_pad, prm_arr, cmat_arr)

        # Un-pad / un-transpose inside the jit so XLA fuses it with consumers.
        return ao_pad[:norb, :M].T.reshape(nbatch, nelec, norb)

    forward_jit = jax.jit(_forward)
    return lambda pos: forward_jit(pos, prm_dev, cmat_dev)


# ---------------------------------------------------------------------------
# Pure-numpy reference (mirrors the PyTorch forward, derivative=0, jacobian)
# ---------------------------------------------------------------------------
def reference_forward(pos, atom_coords, nshells, bas_exp, bas_n,
                      bas_kx, bas_ky, bas_kz, bas_coeffs, norm_cst,
                      index_ctr, norb):
    pos = np.asarray(pos, np.float64)
    nbatch = pos.shape[0]
    nelec = pos.shape[1] // 3
    bas_coords = np.repeat(np.asarray(atom_coords, np.float64), nshells, axis=0)
    xyz = pos.reshape(nbatch, nelec, 1, 3) - bas_coords[None, None]
    r = np.sqrt((xyz ** 2).sum(-1))
    R = r ** bas_n * np.exp(-bas_exp * r ** 2)
    Y = xyz[..., 0] ** bas_kx * xyz[..., 1] ** bas_ky * xyz[..., 2] ** bas_kz
    bas = norm_cst * bas_coeffs * R * Y
    ao = np.zeros((nbatch, nelec, norb))
    np.add.at(ao, (slice(None), slice(None), np.asarray(index_ctr)), bas)
    return ao


if __name__ == "__main__":
    # --- synthetic "molecule" (deterministic parameters, no file loads) -----
    nbatch, nelec, ndim = 64, 8, 3          # M = 512 electron samples
    natoms, norb = 2, 8
    nshells = np.array([8, 8], np.int32)    # primitives per atom
    nbas = int(nshells.sum())               # 16

    atom_coords = np.array([[0.0, 0.0, -0.7],
                            [0.0, 0.0, 0.7]], np.float32)
    bas_exp = np.tile(np.array([0.5, 1.0, 2.0, 0.8, 1.5, 0.3, 2.5, 1.2],
                               np.float32), natoms)
    bas_n = np.tile(np.array([0, 0, 0, 1, 1, 2, 3, 1], np.int32), natoms)
    bas_kx = np.tile(np.array([0, 0, 1, 0, 0, 1, 2, 0], np.int32), natoms)
    bas_ky = np.tile(np.array([0, 1, 0, 0, 1, 0, 0, 2], np.int32), natoms)
    bas_kz = np.tile(np.array([0, 0, 0, 1, 1, 0, 0, 0], np.int32), natoms)
    bas_coeffs = np.tile(np.array([1.0, 0.8, 0.6, 1.2, 0.9, 0.7, 1.1, 0.5],
                                  np.float32), natoms)
    norm_cst = np.tile(np.array([0.9, 1.3, 0.75, 1.05, 0.65, 1.4, 0.85, 1.15],
                                np.float32), natoms)
    index_ctr = np.array([0, 1, 2, 3, 3, 4, 5, 6,
                          0, 1, 2, 7, 7, 4, 5, 6], np.int32)

    # one-time molecule setup (packs constants on device, jits forward)
    ao_forward = build_atomic_orbitals_forward(
        atom_coords, nshells, bas_exp, bas_n, bas_kx, bas_ky, bas_kz,
        bas_coeffs, norm_cst, index_ctr, norb, nelec)

    # --- electron positions: (nbatch, nelec * 3) ----------------------------
    key = jax.random.PRNGKey(0)
    pos = jax.random.normal(key, (nbatch, nelec * ndim), dtype=jnp.float32)

    ao = jax.block_until_ready(ao_forward(pos))

    ao_ref = reference_forward(np.asarray(pos), atom_coords, nshells, bas_exp,
                               bas_n, bas_kx, bas_ky, bas_kz, bas_coeffs,
                               norm_cst, index_ctr, norb)

    assert ao.shape == (nbatch, nelec, norb)
    np.testing.assert_allclose(np.asarray(ao), ao_ref, rtol=1e-4, atol=1e-4)
    print("KERNEL_OK")
</pallas_src>

<mosaic_0001>
module attributes {stable_mosaic.version = 11 : i64} {
  func.func @ao_kernel(%arg0: i32, %arg1: memref<3x512xf32, #tpu.memory_space<vmem>>, %arg2: memref<16x16xf32, #tpu.memory_space<vmem>>, %arg3: memref<8x16xf32, #tpu.memory_space<vmem>>, %arg4: memref<8x512xf32, #tpu.memory_space<vmem>>) attributes {dimension_semantics = [#tpu.dimension_semantics<parallel>], iteration_bounds = array<i64: 1>, scalar_prefetch = 0 : i64, scratch_operands = 0 : i64, tpu.core_type = #tpu.core_type<tc>, window_params = [{transform_indices = @transform_0, window_bounds = array<i64: 3, 512>}, {pipeline_mode = #tpu.pipeline_mode<synchronous>, transform_indices = @transform_1, window_bounds = array<i64: 16, 16>}, {pipeline_mode = #tpu.pipeline_mode<synchronous>, transform_indices = @transform_2, window_bounds = array<i64: 8, 16>}, {transform_indices = @transform_3, window_bounds = array<i64: 8, 512>}]} {
    %c0 = arith.constant 0 : index
    %c0_0 = arith.constant 0 : index
    %0 = vector.load %arg2[%c0, %c0_0] : memref<16x16xf32, #tpu.memory_space<vmem>>, vector<16x1xf32>
    %c0_1 = arith.constant 0 : index
    %c1 = arith.constant 1 : index
    %1 = vector.load %arg2[%c0_1, %c1] : memref<16x16xf32, #tpu.memory_space<vmem>>, vector<16x1xf32>
    %c0_2 = arith.constant 0 : index
    %c2 = arith.constant 2 : index
    %2 = vector.load %arg2[%c0_2, %c2] : memref<16x16xf32, #tpu.memory_space<vmem>>, vector<16x1xf32>
    %c0_3 = arith.constant 0 : index
    %c3 = arith.constant 3 : index
    %3 = vector.load %arg2[%c0_3, %c3] : memref<16x16xf32, #tpu.memory_space<vmem>>, vector<16x1xf32>
    %c0_4 = arith.constant 0 : index
    %c0_5 = arith.constant 0 : index
    %4 = vector.load %arg1[%c0_4, %c0_5] : memref<3x512xf32, #tpu.memory_space<vmem>>, vector<1x512xf32>
    %5 = vector.broadcast %4 : vector<1x512xf32> to vector<16x512xf32>
    %6 = vector.broadcast %0 : vector<16x1xf32> to vector<16x512xf32>
    %7 = arith.subf %5, %6 : vector<16x512xf32>
    %c1_6 = arith.constant 1 : index
    %c0_7 = arith.constant 0 : index
    %8 = vector.load %arg1[%c1_6, %c0_7] : memref<3x512xf32, #tpu.memory_space<vmem>>, vector<1x512xf32>
    %9 = vector.broadcast %8 : vector<1x512xf32> to vector<16x512xf32>
    %10 = vector.broadcast %1 : vector<16x1xf32> to vector<16x512xf32>
    %11 = arith.subf %9, %10 : vector<16x512xf32>
    %c2_8 = arith.constant 2 : index
    %c0_9 = arith.constant 0 : index
    %12 = vector.load %arg1[%c2_8, %c0_9] : memref<3x512xf32, #tpu.memory_space<vmem>>, vector<1x512xf32>
    %13 = vector.broadcast %12 : vector<1x512xf32> to vector<16x512xf32>
    %14 = vector.broadcast %2 : vector<16x1xf32> to vector<16x512xf32>
    %15 = arith.subf %13, %14 : vector<16x512xf32>
    %16 = arith.mulf %7, %7 : vector<16x512xf32>
    %17 = arith.mulf %11, %11 : vector<16x512xf32>
    %18 = arith.addf %16, %17 : vector<16x512xf32>
    %19 = arith.mulf %15, %15 : vector<16x512xf32>
    %20 = arith.addf %18, %19 : vector<16x512xf32>
    %21 = math.sqrt %20 : vector<16x512xf32>
    %22 = arith.mulf %21, %20 : vector<16x512xf32>
    %c0_10 = arith.constant 0 : index
    %c4 = arith.constant 4 : index
    %23 = vector.load %arg2[%c0_10, %c4] : memref<16x16xf32, #tpu.memory_space<vmem>>, vector<16x1xf32>
    %c0_11 = arith.constant 0 : index
    %c5 = arith.constant 5 : index
    %24 = vector.load %arg2[%c0_11, %c5] : memref<16x16xf32, #tpu.memory_space<vmem>>, vector<16x1xf32>
    %25 = vector.broadcast %24 : vector<16x1xf32> to vector<16x512xf32>
    %26 = arith.mulf %25, %21 : vector<16x512xf32>
    %27 = vector.broadcast %23 : vector<16x1xf32> to vector<16x512xf32>
    %28 = arith.addf %27, %26 : vector<16x512xf32>
    %c0_12 = arith.constant 0 : index
    %c6 = arith.constant 6 : index
    %29 = vector.load %arg2[%c0_12, %c6] : memref<16x16xf32, #tpu.memory_space<vmem>>, vector<16x1xf32>
    %30 = vector.broadcast %29 : vector<16x1xf32> to vector<16x512xf32>
    %31 = arith.mulf %30, %20 : vector<16x512xf32>
    %32 = arith.addf %28, %31 : vector<16x512xf32>
    %c0_13 = arith.constant 0 : index
    %c7 = arith.constant 7 : index
    %33 = vector.load %arg2[%c0_13, %c7] : memref<16x16xf32, #tpu.memory_space<vmem>>, vector<16x1xf32>
    %34 = vector.broadcast %33 : vector<16x1xf32> to vector<16x512xf32>
    %35 = arith.mulf %34, %22 : vector<16x512xf32>
    %36 = arith.addf %32, %35 : vector<16x512xf32>
    %37 = vector.broadcast %3 : vector<16x1xf32> to vector<16x512xf32>
    %38 = arith.mulf %37, %20 : vector<16x512xf32>
    %39 = math.exp %38 : vector<16x512xf32>
    %40 = arith.mulf %36, %39 : vector<16x512xf32>
    %41 = arith.mulf %7, %7 : vector<16x512xf32>
    %c0_14 = arith.constant 0 : index
    %c8 = arith.constant 8 : index
    %42 = vector.load %arg2[%c0_14, %c8] : memref<16x16xf32, #tpu.memory_space<vmem>>, vector<16x1xf32>
    %c0_15 = arith.constant 0 : index
    %c9 = arith.constant 9 : index
    %43 = vector.load %arg2[%c0_15, %c9] : memref<16x16xf32, #tpu.memory_space<vmem>>, vector<16x1xf32>
    %44 = vector.broadcast %43 : vector<16x1xf32> to vector<16x512xf32>
    %45 = arith.mulf %44, %7 : vector<16x512xf32>
    %46 = vector.broadcast %42 : vector<16x1xf32> to vector<16x512xf32>
    %47 = arith.addf %46, %45 : vector<16x512xf32>
    %c0_16 = arith.constant 0 : index
    %c10 = arith.constant 10 : index
    %48 = vector.load %arg2[%c0_16, %c10] : memref<16x16xf32, #tpu.memory_space<vmem>>, vector<16x1xf32>
    %49 = vector.broadcast %48 : vector<16x1xf32> to vector<16x512xf32>
    %50 = arith.mulf %49, %41 : vector<16x512xf32>
    %51 = arith.addf %47, %50 : vector<16x512xf32>
    %52 = arith.mulf %40, %51 : vector<16x512xf32>
    %53 = arith.mulf %11, %11 : vector<16x512xf32>
    %c0_17 = arith.constant 0 : index
    %c11 = arith.constant 11 : index
    %54 = vector.load %arg2[%c0_17, %c11] : memref<16x16xf32, #tpu.memory_space<vmem>>, vector<16x1xf32>
    %c0_18 = arith.constant 0 : index
    %c12 = arith.constant 12 : index
    %55 = vector.load %arg2[%c0_18, %c12] : memref<16x16xf32, #tpu.memory_space<vmem>>, vector<16x1xf32>
    %56 = vector.broadcast %55 : vector<16x1xf32> to vector<16x512xf32>
    %57 = arith.mulf %56, %11 : vector<16x512xf32>
    %58 = vector.broadcast %54 : vector<16x1xf32> to vector<16x512xf32>
    %59 = arith.addf %58, %57 : vector<16x512xf32>
    %c0_19 = arith.constant 0 : index
    %c13 = arith.constant 13 : index
    %60 = vector.load %arg2[%c0_19, %c13] : memref<16x16xf32, #tpu.memory_space<vmem>>, vector<16x1xf32>
    %61 = vector.broadcast %60 : vector<16x1xf32> to vector<16x512xf32>
    %62 = arith.mulf %61, %53 : vector<16x512xf32>
    %63 = arith.addf %59, %62 : vector<16x512xf32>
    %64 = arith.mulf %52, %63 : vector<16x512xf32>
    %c0_20 = arith.constant 0 : index
    %c14 = arith.constant 14 : index
    %65 = vector.load %arg2[%c0_20, %c14] : memref<16x16xf32, #tpu.memory_space<vmem>>, vector<16x1xf32>
    %c0_21 = arith.constant 0 : index
    %c15 = arith.constant 15 : index
    %66 = vector.load %arg2[%c0_21, %c15] : memref<16x16xf32, #tpu.memory_space<vmem>>, vector<16x1xf32>
    %67 = vector.broadcast %66 : vector<16x1xf32> to vector<16x512xf32>
    %68 = arith.mulf %67, %15 : vector<16x512xf32>
    %69 = vector.broadcast %65 : vector<16x1xf32> to vector<16x512xf32>
    %70 = arith.addf %69, %68 : vector<16x512xf32>
    %71 = arith.mulf %64, %70 : vector<16x512xf32>
    %c0_22 = arith.constant 0 : index
    %c0_23 = arith.constant 0 : index
    %72 = vector.load %arg3[%c0_22, %c0_23] : memref<8x16xf32, #tpu.memory_space<vmem>>, vector<8x16xf32>
    %cst = arith.constant dense<0.000000e+00> : vector<8x512xf32>
    %73 = tpu.matmul %72, %71, %cst {dimension_numbers = #tpu.dot_dimension_numbers<[1], [0], [0], [1], [0, 0, 1, 1], [], []>, precision = #tpu.contract_precision<fp32>} : vector<8x16xf32>, vector<16x512xf32>, vector<8x512xf32> -> vector<8x512xf32>
    %c0_24 = arith.constant 0 : index
    %c0_25 = arith.constant 0 : index
    %74 = vector.load %arg4[%c0_24, %c0_25] : memref<8x512xf32, #tpu.memory_space<vmem>>, vector<8x512xf32>
    tpu.vector_store %arg4[%c0_24, %c0_25], %73 {strides = array<i32>} : memref<8x512xf32, #tpu.memory_space<vmem>>, vector<8x512xf32>,
    return
  }
  func.func @transform_0(%arg0: i32) -> (i32, i32) {
    %c0_i32 = arith.constant 0 : i32
    %c0_i32_0 = arith.constant 0 : i32
    return %c0_i32, %arg0 : i32, i32
  }
  func.func @transform_1(%arg0: i32) -> (i32, i32) {
    %c0_i32 = arith.constant 0 : i32
    %c0_i32_0 = arith.constant 0 : i32
    %c0_i32_1 = arith.constant 0 : i32
    return %c0_i32, %c0_i32_0 : i32, i32
  }
  func.func @transform_2(%arg0: i32) -> (i32, i32) {
    %c0_i32 = arith.constant 0 : i32
    %c0_i32_0 = arith.constant 0 : i32
    %c0_i32_1 = arith.constant 0 : i32
    return %c0_i32, %c0_i32_0 : i32, i32
  }
  func.func @transform_3(%arg0: i32) -> (i32, i32) {
    %c0_i32 = arith.constant 0 : i32
    %c0_i32_0 = arith.constant 0 : i32
    return %c0_i32, %arg0 : i32, i32
  }
}

</mosaic_0001>

<llo_original>
// kernel: _forward.1
$region0: #{_forward.1}
  #allocation0 [shape = 'u32[]', space=smem, size = 0x4, offset = 0x4, fixed_abs, tag = 'smem constant byte address 0x4 - core index']
  #allocation1 [shape = 'u32[72,128]{1,0:T(1,128)}', space=vmem, size = 0x9000, scoped, tag = 'internal scratch']
  %s0 = inlined_call_operand.vmem [shape: f32[3,512], index: 0, kind: input, shape index: {}]
  %s1 = inlined_call_operand.vmem [shape: f32[16,16], index: 1, kind: input, shape index: {}]
  %s2 = inlined_call_operand.vmem [shape: f32[8,16], index: 2, kind: input, shape index: {}]
  %s3 = inlined_call_operand.vmem [shape: f32[8,512], index: 3, kind: output, shape index: {}]
  %s4 = sld [smem:[#allocation0]]
  $region22: #{_forward.1} parent=0
    _
  %s6 = ssub.s32 1, %s4
  %s7 = scalar_select 0, %s6, %s4
  // Predicated region
  $region2: #{_forward.1} parent=0 // pred_check
    _
  $region3: #{_forward.1} parent=0 // pred_check_branch
    %9 = sbr.rel (0) target = $region5
  $region4: #{_forward.1} parent=0 // pred_region
    _
  $region5: #{_forward.1} parent=0 // pred_fallthru
    _
  // Predicated region
  $region6: #{_forward.1} parent=0 // pred_check
    _
  $region7: #{_forward.1} parent=0 // pred_check_branch
    %11 = sbr.rel (0) target = $region9
  $region8: #{_forward.1} parent=0 // pred_region
    _
  $region9: #{_forward.1} parent=0 // pred_fallthru
    _
  // Predicated region
  $region10: #{_forward.1} parent=0 // pred_check
    _
  $region11: #{_forward.1} parent=0 // pred_check_branch
    %13 = sbr.rel (0) target = $region13
  $region12: #{_forward.1} parent=0 // pred_region
    _
  $region13: #{_forward.1} parent=0 // pred_fallthru
    _
  %v14 = vld [vmem:[%s1] sm:$0xff]
  %v15 = vld [vmem:[%s1 + $0x8] sm:$0xff]
  %v16 = vld [vmem:[%s0] ss:$4 sm:$0xf]
  %v18 = vperm.slane %v16, 0
  %v19 = vperm.slane %v16, 1
  %v20 = vperm.slane %v16, 2
  %v21 = vperm.slane %v16, 3
  %27 = vset.pattern.permute.xlu0 0
  %28 = vperm.xlu0 %27, %v14
  %v29 = vpop.permute.xlu0 %28
  %32 = vset.pattern.permute.xlu0 0
  %33 = vperm.xlu0 %32, %v15
  %v34 = vpop.permute.xlu0 %33
  %v36 = vsub.f32 %v18, %v29
  %v37 = vsub.f32 %v19, %v29
  %v38 = vsub.f32 %v20, %v29
  %v39 = vsub.f32 %v21, %v29
  %v40 = vsub.f32 %v18, %v34
  %v41 = vsub.f32 %v19, %v34
  %v42 = vsub.f32 %v20, %v34
  %v43 = vsub.f32 %v21, %v34
  %s44 = scalar_lea.vmem %s0, 1
  %v45 = vld [vmem:[%s44] ss:$4 sm:$0xf]
  %v47 = vperm.slane %v45, 0
  %v48 = vperm.slane %v45, 1
  %v49 = vperm.slane %v45, 2
  %v50 = vperm.slane %v45, 3
  %55 = vset.pattern.permute.xlu0 1
  %56 = vperm.xlu0 %55, %v14
  %v57 = vpop.permute.xlu0 %56
  %59 = vset.pattern.permute.xlu0 1
  %60 = vperm.xlu0 %59, %v15
  %v61 = vpop.permute.xlu0 %60
  %v63 = vsub.f32 %v47, %v57
  %v64 = vsub.f32 %v48, %v57
  %v65 = vsub.f32 %v49, %v57
  %v66 = vsub.f32 %v50, %v57
  %v67 = vsub.f32 %v47, %v61
  %v68 = vsub.f32 %v48, %v61
  %v69 = vsub.f32 %v49, %v61
  %v70 = vsub.f32 %v50, %v61
  %s71 = scalar_lea.vmem %s0, 2
  %v72 = vld [vmem:[%s71] ss:$4 sm:$0xf]
  %v74 = vperm.slane %v72, 0
  %v75 = vperm.slane %v72, 1
  %v76 = vperm.slane %v72, 2
  %v77 = vperm.slane %v72, 3
  %82 = vset.pattern.permute.xlu0 2
  %83 = vperm.xlu0 %82, %v14
  %v84 = vpop.permute.xlu0 %83
  %86 = vset.pattern.permute.xlu0 2
  %87 = vperm.xlu0 %86, %v15
  %v88 = vpop.permute.xlu0 %87
  %v90 = vsub.f32 %v74, %v84
  %v91 = vsub.f32 %v75, %v84
  %v92 = vsub.f32 %v76, %v84
  %v93 = vsub.f32 %v77, %v84
  %v94 = vsub.f32 %v74, %v88
  %v95 = vsub.f32 %v75, %v88
  %v96 = vsub.f32 %v76, %v88
  %v97 = vsub.f32 %v77, %v88
  %v98 = vmul.f32 %v36, %v36
  %v99 = vmul.f32 %v37, %v37
  %v100 = vmul.f32 %v38, %v38
  %v101 = vmul.f32 %v39, %v39
  %v102 = vmul.f32 %v40, %v40
  %v103 = vmul.f32 %v41, %v41
  %v104 = vmul.f32 %v42, %v42
  %v105 = vmul.f32 %v43, %v43
  %v106 = vmul.f32 %v63, %v63
  %v107 = vmul.f32 %v64, %v64
  %v108 = vmul.f32 %v65, %v65
  %v109 = vmul.f32 %v66, %v66
  %v110 = vmul.f32 %v67, %v67
  %v111 = vmul.f32 %v68, %v68
  %v112 = vmul.f32 %v69, %v69
  %v113 = vmul.f32 %v70, %v70
  %v114 = vadd.f32 %v98, %v106
  %v115 = vadd.f32 %v99, %v107
  %v116 = vadd.f32 %v100, %v108
  %v117 = vadd.f32 %v101, %v109
  %v118 = vadd.f32 %v102, %v110
  %v119 = vadd.f32 %v103, %v111
  %v120 = vadd.f32 %v104, %v112
  %v121 = vadd.f32 %v105, %v113
  %v122 = vmul.f32 %v90, %v90
  %v123 = vmul.f32 %v91, %v91
  %v124 = vmul.f32 %v92, %v92
  %v125 = vmul.f32 %v93, %v93
  %v126 = vmul.f32 %v94, %v94
  %v127 = vmul.f32 %v95, %v95
  %v128 = vmul.f32 %v96, %v96
  %v129 = vmul.f32 %v97, %v97
  %v130 = vadd.f32 %v114, %v122
  %v131 = vadd.f32 %v115, %v123
  %v132 = vadd.f32 %v116, %v124
  %v133 = vadd.f32 %v117, %v125
  %v134 = vadd.f32 %v118, %v126
  %v135 = vadd.f32 %v119, %v127
  %v136 = vadd.f32 %v120, %v128
  %v137 = vadd.f32 %v121, %v129
  %v138 = vrsqrt.pop %v130
  %v139 = vmul.f32 %v138, %v130
  %v140 = vmul.f32 %v139, %v138
  %v141 = vmul.f32 0.5, %v140
  %v142 = vsub.f32 1.5, %v141
  %v143 = vmul.f32 %v138, %v142
  %v144 = vmul.f32 %v130, %v143
  %vm145 = vcmp.eq.f32.partialorder %v130, inf
  %v146 = vsel %vm145, %v130, %v144
  %vm147 = vcmp.eq.f32.partialorder %v130, 0.0
  %v148 = vand.u32 %v130, 2147483648
  %v149 = vsel %vm147, %v148, %v146
  %v150 = vrsqrt.pop %v131
  %v151 = vmul.f32 %v150, %v131
  %v152 = vmul.f32 %v151, %v150
  %v153 = vmul.f32 0.5, %v152
  %v154 = vsub.f32 1.5, %v153
  %v155 = vmul.f32 %v150, %v154
  %v156 = vmul.f32 %v131, %v155
  %vm157 = vcmp.eq.f32.partialorder %v131, inf
  %v158 = vsel %vm157, %v131, %v156
  %vm159 = vcmp.eq.f32.partialorder %v131, 0.0
  %v160 = vand.u32 %v131, 2147483648
  %v161 = vsel %vm159, %v160, %v158
  %v162 = vrsqrt.pop %v132
  %v163 = vmul.f32 %v162, %v132
  %v164 = vmul.f32 %v163, %v162
  %v165 = vmul.f32 0.5, %v164
  %v166 = vsub.f32 1.5, %v165
  %v167 = vmul.f32 %v162, %v166
  %v168 = vmul.f32 %v132, %v167
  %vm169 = vcmp.eq.f32.partialorder %v132, inf
  %v170 = vsel %vm169, %v132, %v168
  %vm171 = vcmp.eq.f32.partialorder %v132, 0.0
  %v172 = vand.u32 %v132, 2147483648
  %v173 = vsel %vm171, %v172, %v170
  %v174 = vrsqrt.pop %v133
  %v175 = vmul.f32 %v174, %v133
  %v176 = vmul.f32 %v175, %v174
  %v177 = vmul.f32 0.5, %v176
  %v178 = vsub.f32 1.5, %v177
  %v179 = vmul.f32 %v174, %v178
  %v180 = vmul.f32 %v133, %v179
  %vm181 = vcmp.eq.f32.partialorder %v133, inf
  %v182 = vsel %vm181, %v133, %v180
  %vm183 = vcmp.eq.f32.partialorder %v133, 0.0
  %v184 = vand.u32 %v133, 2147483648
  %v185 = vsel %vm183, %v184, %v182
  %v186 = vrsqrt.pop %v134
  %v187 = vmul.f32 %v186, %v134
  %v188 = vmul.f32 %v187, %v186
  %v189 = vmul.f32 0.5, %v188
  %v190 = vsub.f32 1.5, %v189
  %v191 = vmul.f32 %v186, %v190
  %v192 = vmul.f32 %v134, %v191
  %vm193 = vcmp.eq.f32.partialorder %v134, inf
  %v194 = vsel %vm193, %v134, %v192
  %vm195 = vcmp.eq.f32.partialorder %v134, 0.0
  %v196 = vand.u32 %v134, 2147483648
  %v197 = vsel %vm195, %v196, %v194
  %v198 = vrsqrt.pop %v135
  %v199 = vmul.f32 %v198, %v135
  %v200 = vmul.f32 %v199, %v198
  %v201 = vmul.f32 0.5, %v200
  %v202 = vsub.f32 1.5, %v201
  %v203 = vmul.f32 %v198, %v202
  %v204 = vmul.f32 %v135, %v203
  %vm205 = vcmp.eq.f32.partialorder %v135, inf
  %v206 = vsel %vm205, %v135, %v204
  %vm207 = vcmp.eq.f32.partialorder %v135, 0.0
  %v208 = vand.u32 %v135, 2147483648
  %v209 = vsel %vm207, %v208, %v206
  %v210 = vrsqrt.pop %v136
  %v211 = vmul.f32 %v210, %v136
  %v212 = vmul.f32 %v211, %v210
  %v213 = vmul.f32 0.5, %v212
  %v214 = vsub.f32 1.5, %v213
  %v215 = vmul.f32 %v210, %v214
  %v216 = vmul.f32 %v136, %v215
  %vm217 = vcmp.eq.f32.partialorder %v136, inf
  %v218 = vsel %vm217, %v136, %v216
  %vm219 = vcmp.eq.f32.partialorder %v136, 0.0
  %v220 = vand.u32 %v136, 2147483648
  %v221 = vsel %vm219, %v220, %v218
  %v222 = vrsqrt.pop %v137
  %v223 = vmul.f32 %v222, %v137
  %v224 = vmul.f32 %v223, %v222
  %v225 = vmul.f32 0.5, %v224
  %v226 = vsub.f32 1.5, %v225
  %v227 = vmul.f32 %v222, %v226
  %v228 = vmul.f32 %v137, %v227
  %vm229 = vcmp.eq.f32.partialorder %v137, inf
  %v230 = vsel %vm229, %v137, %v228
  %vm231 = vcmp.eq.f32.partialorder %v137, 0.0
  %v232 = vand.u32 %v137, 2147483648
  %v233 = vsel %vm231, %v232, %v230
  %v234 = vmul.f32 %v149, %v130
  %v235 = vmul.f32 %v161, %v131
  %v236 = vmul.f32 %v173, %v132
  %v237 = vmul.f32 %v185, %v133
  %v238 = vmul.f32 %v197, %v134
  %v239 = vmul.f32 %v209, %v135
  %v240 = vmul.f32 %v221, %v136
  %v241 = vmul.f32 %v233, %v137
  %242 = vset.pattern.permute.xlu0 5
  %243 = vperm.xlu0 %242, %v14
  %v244 = vpop.permute.xlu0 %243
  %246 = vset.pattern.permute.xlu0 5
  %247 = vperm.xlu0 %246, %v15
  %v248 = vpop.permute.xlu0 %247
  %v250 = vmul.f32 %v244, %v149
  %v251 = vmul.f32 %v244, %v161
  %v252 = vmul.f32 %v244, %v173
  %v253 = vmul.f32 %v244, %v185
  %v254 = vmul.f32 %v248, %v197
  %v255 = vmul.f32 %v248, %v209
  %v256 = vmul.f32 %v248, %v221
  %v257 = vmul.f32 %v248, %v233
  %258 = vset.pattern.permute.xlu0 4
  %259 = vperm.xlu0 %258, %v14
  %v260 = vpop.permute.xlu0 %259
  %262 = vset.pattern.permute.xlu0 4
  %263 = vperm.xlu0 %262, %v15
  %v264 = vpop.permute.xlu0 %263
  %v266 = vadd.f32 %v260, %v250
  %v267 = vadd.f32 %v260, %v251
  %v268 = vadd.f32 %v260, %v252
  %v269 = vadd.f32 %v260, %v253
  %v270 = vadd.f32 %v264, %v254
  %v271 = vadd.f32 %v264, %v255
  %v272 = vadd.f32 %v264, %v256
  %v273 = vadd.f32 %v264, %v257
  %274 = vset.pattern.permute.xlu0 6
  %275 = vperm.xlu0 %274, %v14
  %v276 = vpop.permute.xlu0 %275
  %278 = vset.pattern.permute.xlu0 6
  %279 = vperm.xlu0 %278, %v15
  %v280 = vpop.permute.xlu0 %279
  %v282 = vmul.f32 %v276, %v130
  %v283 = vmul.f32 %v276, %v131
  %v284 = vmul.f32 %v276, %v132
  %v285 = vmul.f32 %v276, %v133
  %v286 = vmul.f32 %v280, %v134
  %v287 = vmul.f32 %v280, %v135
  %v288 = vmul.f32 %v280, %v136
  %v289 = vmul.f32 %v280, %v137
  %v290 = vadd.f32 %v266, %v282
  %v291 = vadd.f32 %v267, %v283
  %v292 = vadd.f32 %v268, %v284
  %v293 = vadd.f32 %v269, %v285
  %v294 = vadd.f32 %v270, %v286
  %v295 = vadd.f32 %v271, %v287
  %v296 = vadd.f32 %v272, %v288
  %v297 = vadd.f32 %v273, %v289
  %298 = vset.pattern.permute.xlu0 7
  %299 = vperm.xlu0 %298, %v14
  %v300 = vpop.permute.xlu0 %299
  %302 = vset.pattern.permute.xlu0 7
  %303 = vperm.xlu0 %302, %v15
  %v304 = vpop.permute.xlu0 %303
  %v306 = vmul.f32 %v300, %v234
  %v307 = vmul.f32 %v300, %v235
  %v308 = vmul.f32 %v300, %v236
  %v309 = vmul.f32 %v300, %v237
  %v310 = vmul.f32 %v304, %v238
  %v311 = vmul.f32 %v304, %v239
  %v312 = vmul.f32 %v304, %v240
  %v313 = vmul.f32 %v304, %v241
  %v314 = vadd.f32 %v290, %v306
  %v315 = vadd.f32 %v291, %v307
  %v316 = vadd.f32 %v292, %v308
  %v317 = vadd.f32 %v293, %v309
  %v318 = vadd.f32 %v294, %v310
  %v319 = vadd.f32 %v295, %v311
  %v320 = vadd.f32 %v296, %v312
  %v321 = vadd.f32 %v297, %v313
  %322 = vset.pattern.permute.xlu0 3
  %323 = vperm.xlu0 %322, %v14
  %v324 = vpop.permute.xlu0 %323
  %326 = vset.pattern.permute.xlu0 3
  %327 = vperm.xlu0 %326, %v15
  %v328 = vpop.permute.xlu0 %327
  %v330 = vmul.f32 %v324, %v130
  %v331 = vmul.f32 %v324, %v131
  %v332 = vmul.f32 %v324, %v132
  %v333 = vmul.f32 %v324, %v133
  %v334 = vmul.f32 %v328, %v134
  %v335 = vmul.f32 %v328, %v135
  %v336 = vmul.f32 %v328, %v136
  %v337 = vmul.f32 %v328, %v137
  %v338 = vmul.f32 %v330, 1.442695
  %v339 = vpow.pop %v338
  %v340 = vmul.f32 %v331, 1.442695
  %v341 = vpow.pop %v340
  %v342 = vmul.f32 %v332, 1.442695
  %v343 = vpow.pop %v342
  %v344 = vmul.f32 %v333, 1.442695
  %v345 = vpow.pop %v344
  %v346 = vmul.f32 %v334, 1.442695
  %v347 = vpow.pop %v346
  %v348 = vmul.f32 %v335, 1.442695
  %v349 = vpow.pop %v348
  %v350 = vmul.f32 %v336, 1.442695
  %v351 = vpow.pop %v350
  %v352 = vmul.f32 %v337, 1.442695
  %v353 = vpow.pop %v352
  %v354 = vmul.f32 %v314, %v339
  %v355 = vmul.f32 %v315, %v341
  %v356 = vmul.f32 %v316, %v343
  %v357 = vmul.f32 %v317, %v345
  %v358 = vmul.f32 %v318, %v347
  %v359 = vmul.f32 %v319, %v349
  %v360 = vmul.f32 %v320, %v351
  %v361 = vmul.f32 %v321, %v353
  %362 = vset.pattern.permute.xlu0 9
  %363 = vperm.xlu0 %362, %v14
  %v364 = vpop.permute.xlu0 %363
  %366 = vset.pattern.permute.xlu0 9
  %367 = vperm.xlu0 %366, %v15
  %v368 = vpop.permute.xlu0 %367
  %v370 = vmul.f32 %v364, %v36
  %v371 = vmul.f32 %v364, %v37
  %v372 = vmul.f32 %v364, %v38
  %v373 = vmul.f32 %v364, %v39
  %v374 = vmul.f32 %v368, %v40
  %v375 = vmul.f32 %v368, %v41
  %v376 = vmul.f32 %v368, %v42
  %v377 = vmul.f32 %v368, %v43
  %378 = vset.pattern.permute.xlu0 8
  %379 = vperm.xlu0 %378, %v14
  %v380 = vpop.permute.xlu0 %379
  %382 = vset.pattern.permute.xlu0 8
  %383 = vperm.xlu0 %382, %v15
  %v384 = vpop.permute.xlu0 %383
  %v386 = vadd.f32 %v380, %v370
  %v387 = vadd.f32 %v380, %v371
  %v388 = vadd.f32 %v380, %v372
  %v389 = vadd.f32 %v380, %v373
  %v390 = vadd.f32 %v384, %v374
  %v391 = vadd.f32 %v384, %v375
  %v392 = vadd.f32 %v384, %v376
  %v393 = vadd.f32 %v384, %v377
  %394 = vset.pattern.permute.xlu0 10
  %395 = vperm.xlu0 %394, %v14
  %v396 = vpop.permute.xlu0 %395
  %398 = vset.pattern.permute.xlu0 10
  %399 = vperm.xlu0 %398, %v15
  %v400 = vpop.permute.xlu0 %399
  %v402 = vmul.f32 %v396, %v98
  %v403 = vmul.f32 %v396, %v99
  %v404 = vmul.f32 %v396, %v100
  %v405 = vmul.f32 %v396, %v101
  %v406 = vmul.f32 %v400, %v102
  %v407 = vmul.f32 %v400, %v103
  %v408 = vmul.f32 %v400, %v104
  %v409 = vmul.f32 %v400, %v105
  %v410 = vadd.f32 %v386, %v402
  %v411 = vadd.f32 %v387, %v403
  %v412 = vadd.f32 %v388, %v404
  %v413 = vadd.f32 %v389, %v405
  %v414 = vadd.f32 %v390, %v406
  %v415 = vadd.f32 %v391, %v407
  %v416 = vadd.f32 %v392, %v408
  %v417 = vadd.f32 %v393, %v409
  %v418 = vmul.f32 %v354, %v410
  %v419 = vmul.f32 %v355, %v411
  %v420 = vmul.f32 %v356, %v412
  %v421 = vmul.f32 %v357, %v413
  %v422 = vmul.f32 %v358, %v414
  %v423 = vmul.f32 %v359, %v415
  %v424 = vmul.f32 %v360, %v416
  %v425 = vmul.f32 %v361, %v417
  %426 = vset.pattern.permute.xlu0 12
  %427 = vperm.xlu0 %426, %v14
  %v428 = vpop.permute.xlu0 %427
  %430 = vset.pattern.permute.xlu0 12
  %431 = vperm.xlu0 %430, %v15
  %v432 = vpop.permute.xlu0 %431
  %v434 = vmul.f32 %v428, %v63
  %v435 = vmul.f32 %v428, %v64
  %v436 = vmul.f32 %v428, %v65
  %v437 = vmul.f32 %v428, %v66
  %v438 = vmul.f32 %v432, %v67
  %v439 = vmul.f32 %v432, %v68
  %v440 = vmul.f32 %v432, %v69
  %v441 = vmul.f32 %v432, %v70
  %442 = vset.pattern.permute.xlu0 11
  %443 = vperm.xlu0 %442, %v14
  %v444 = vpop.permute.xlu0 %443
  %446 = vset.pattern.permute.xlu0 11
  %447 = vperm.xlu0 %446, %v15
  %v448 = vpop.permute.xlu0 %447
  %v450 = vadd.f32 %v444, %v434
  %v451 = vadd.f32 %v444, %v435
  %v452 = vadd.f32 %v444, %v436
  %v453 = vadd.f32 %v444, %v437
  %v454 = vadd.f32 %v448, %v438
  %v455 = vadd.f32 %v448, %v439
  %v456 = vadd.f32 %v448, %v440
  %v457 = vadd.f32 %v448, %v441
  %458 = vset.pattern.permute.xlu0 13
  %459 = vperm.xlu0 %458, %v14
  %v460 = vpop.permute.xlu0 %459
  %462 = vset.pattern.permute.xlu0 13
  %463 = vperm.xlu0 %462, %v15
  %v464 = vpop.permute.xlu0 %463
  %v466 = vmul.f32 %v460, %v106
  %v467 = vmul.f32 %v460, %v107
  %v468 = vmul.f32 %v460, %v108
  %v469 = vmul.f32 %v460, %v109
  %v470 = vmul.f32 %v464, %v110
  %v471 = vmul.f32 %v464, %v111
  %v472 = vmul.f32 %v464, %v112
  %v473 = vmul.f32 %v464, %v113
  %v474 = vadd.f32 %v450, %v466
  %v475 = vadd.f32 %v451, %v467
  %v476 = vadd.f32 %v452, %v468
  %v477 = vadd.f32 %v453, %v469
  %v478 = vadd.f32 %v454, %v470
  %v479 = vadd.f32 %v455, %v471
  %v480 = vadd.f32 %v456, %v472
  %v481 = vadd.f32 %v457, %v473
  %v482 = vmul.f32 %v418, %v474
  %v483 = vmul.f32 %v419, %v475
  %v484 = vmul.f32 %v420, %v476
  %v485 = vmul.f32 %v421, %v477
  %v486 = vmul.f32 %v422, %v478
  %v487 = vmul.f32 %v423, %v479
  %v488 = vmul.f32 %v424, %v480
  %v489 = vmul.f32 %v425, %v481
  %490 = vset.pattern.permute.xlu0 15
  %491 = vperm.xlu0 %490, %v14
  %v492 = vpop.permute.xlu0 %491
  %494 = vset.pattern.permute.xlu0 15
  %495 = vperm.xlu0 %494, %v15
  %v496 = vpop.permute.xlu0 %495
  %v498 = vmul.f32 %v492, %v90
  %v499 = vmul.f32 %v492, %v91
  %v500 = vmul.f32 %v492, %v92
  %v501 = vmul.f32 %v492, %v93
  %v502 = vmul.f32 %v496, %v94
  %v503 = vmul.f32 %v496, %v95
  %v504 = vmul.f32 %v496, %v96
  %v505 = vmul.f32 %v496, %v97
  %506 = vset.pattern.permute.xlu0 14
  %507 = vperm.xlu0 %506, %v14
  %v508 = vpop.permute.xlu0 %507
  %510 = vset.pattern.permute.xlu0 14
  %511 = vperm.xlu0 %510, %v15
  %v512 = vpop.permute.xlu0 %511
  %v514 = vadd.f32 %v508, %v498
  %v515 = vadd.f32 %v508, %v499
  %v516 = vadd.f32 %v508, %v500
  %v517 = vadd.f32 %v508, %v501
  %v518 = vadd.f32 %v512, %v502
  %v519 = vadd.f32 %v512, %v503
  %v520 = vadd.f32 %v512, %v504
  %v521 = vadd.f32 %v512, %v505
  %v522 = vmul.f32 %v482, %v514
  %v523 = vmul.f32 %v483, %v515
  %v524 = vmul.f32 %v484, %v516
  %v525 = vmul.f32 %v485, %v517
  %v526 = vmul.f32 %v486, %v518
  %v527 = vmul.f32 %v487, %v519
  %v528 = vmul.f32 %v488, %v520
  %v529 = vmul.f32 %v489, %v521
  %v530 = vld [vmem:[%s2] sm:$0xff]
  %vm531 = vcmask 130048
  %v533 = vsel %vm531, %v530, 0
  %535 = vmatpush.msra.mxu0 0.0
  %536 = vmatpush.msra.mxu0 0.0
  %537 = vmatpush.msra.mxu0 0.0
  %538 = vmatpush.msra.mxu0 0.0
  %539 = vmatpush.msra.mxu0 0.0
  %540 = vmatpush.msra.mxu0 0.0
  %541 = vmatpush.msra.mxu0 0.0
  %542 = vmatpush.msra.mxu0 0.0
  %543 = vmatpush.msra.mxu0 0.0
  %544 = vmatpush.msra.mxu0 0.0
  %545 = vmatpush.msra.mxu0 0.0
  %546 = vmatpush.msra.mxu0 0.0
  %547 = vmatpush.msra.mxu0 0.0
  %548 = vmatpush.msra.mxu0 0.0
  %v549 = vand.u32 %v526, 4294901760
  %550 = vmatpush.msra.mxu0 %v549
  %v551 = vand.u32 %v522, 4294901760
  %552 = vmatpush.msra.mxu0 %v551
  %v553 = vand.u32 %v533, 4294901760
  %v554 = vsub.f32 %v533, %v553
  %v555 = vand.u32 %v554, 4294901760
  %v556 = vsub.f32 %v554, %v555
  %v557 = vand.u32 %v556, 4294901760
  %558 = vmatmul.f32.gmra.mxu0 %v557
  %v559 = vpop.f32.mrf.mxu0
  %v560 = vadd.f32 0.0, %v559
  %561 = vdwg.mxu0
  %562 = vmatpush.msra.mxu0 0.0
  %563 = vmatpush.msra.mxu0 0.0
  %564 = vmatpush.msra.mxu0 0.0
  %565 = vmatpush.msra.mxu0 0.0
  %566 = vmatpush.msra.mxu0 0.0
  %567 = vmatpush.msra.mxu0 0.0
  %568 = vmatpush.msra.mxu0 0.0
  %569 = vmatpush.msra.mxu0 0.0
  %570 = vmatpush.msra.mxu0 0.0
  %571 = vmatpush.msra.mxu0 0.0
  %572 = vmatpush.msra.mxu0 0.0
  %573 = vmatpush.msra.mxu0 0.0
  %574 = vmatpush.msra.mxu0 0.0
  %575 = vmatpush.msra.mxu0 0.0
  %v576 = vand.u32 %v526, 4294901760
  %v577 = vsub.f32 %v526, %v576
  %v578 = vand.u32 %v577, 4294901760
  %v579 = vsub.f32 %v577, %v578
  %v580 = vand.u32 %v579, 4294901760
  %581 = vmatpush.msra.mxu0 %v580
  %v582 = vand.u32 %v522, 4294901760
  %v583 = vsub.f32 %v522, %v582
  %v584 = vand.u32 %v583, 4294901760
  %v585 = vsub.f32 %v583, %v584
  %v586 = vand.u32 %v585, 4294901760
  %587 = vmatpush.msra.mxu0 %v586
  %v588 = vand.u32 %v533, 4294901760
  %589 = vmatmul.f32.gmra.mxu0 %v588
  %v590 = vpop.f32.mrf.mxu0
  %v591 = vadd.f32 %v560, %v590
  %592 = vdwg.mxu0
  %593 = vmatpush.msra.mxu0 0.0
  %594 = vmatpush.msra.mxu0 0.0
  %595 = vmatpush.msra.mxu0 0.0
  %596 = vmatpush.msra.mxu0 0.0
  %597 = vmatpush.msra.mxu0 0.0
  %598 = vmatpush.msra.mxu0 0.0
  %599 = vmatpush.msra.mxu0 0.0
  %600 = vmatpush.msra.mxu0 0.0
  %601 = vmatpush.msra.mxu0 0.0
  %602 = vmatpush.msra.mxu0 0.0
  %603 = vmatpush.msra.mxu0 0.0
  %604 = vmatpush.msra.mxu0 0.0
  %605 = vmatpush.msra.mxu0 0.0
  %606 = vmatpush.msra.mxu0 0.0
  %v607 = vand.u32 %v526, 4294901760
  %v608 = vsub.f32 %v526, %v607
  %609 = vmatpush.msra.mxu0 %v608
  %v610 = vand.u32 %v522, 4294901760
  %v611 = vsub.f32 %v522, %v610
  %612 = vmatpush.msra.mxu0 %v611
  %v613 = vand.u32 %v533, 4294901760
  %v614 = vsub.f32 %v533, %v613
  %615 = vmatmul.f32.gmra.mxu0 %v614
  %v616 = vpop.f32.mrf.mxu0
  %v617 = vadd.f32 %v591, %v616
  %618 = vdwg.mxu0
  %619 = vmatpush.msra.mxu0 0.0
  %620 = vmatpush.msra.mxu0 0.0
  %621 = vmatpush.msra.mxu0 0.0
  %622 = vmatpush.msra.mxu0 0.0
  %623 = vmatpush.msra.mxu0 0.0
  %624 = vmatpush.msra.mxu0 0.0
  %625 = vmatpush.msra.mxu0 0.0
  %626 = vmatpush.msra.mxu0 0.0
  %627 = vmatpush.msra.mxu0 0.0
  %628 = vmatpush.msra.mxu0 0.0
  %629 = vmatpush.msra.mxu0 0.0
  %630 = vmatpush.msra.mxu0 0.0
  %631 = vmatpush.msra.mxu0 0.0
  %632 = vmatpush.msra.mxu0 0.0
  %v633 = vand.u32 %v526, 4294901760
  %634 = vmatpush.msra.mxu0 %v633
  %v635 = vand.u32 %v522, 4294901760
  %636 = vmatpush.msra.mxu0 %v635
  %v637 = vand.u32 %v533, 4294901760
  %v638 = vsub.f32 %v533, %v637
  %v639 = vand.u32 %v638, 4294901760
  %640 = vmatmul.f32.gmra.mxu0 %v639
  %v641 = vpop.f32.mrf.mxu0
  %v642 = vadd.f32 %v617, %v641
  %643 = vdwg.mxu0
  %644 = vmatpush.msra.mxu0 0.0
  %645 = vmatpush.msra.mxu0 0.0
  %646 = vmatpush.msra.mxu0 0.0
  %647 = vmatpush.msra.mxu0 0.0
  %648 = vmatpush.msra.mxu0 0.0
  %649 = vmatpush.msra.mxu0 0.0
  %650 = vmatpush.msra.mxu0 0.0
  %651 = vmatpush.msra.mxu0 0.0
  %652 = vmatpush.msra.mxu0 0.0
  %653 = vmatpush.msra.mxu0 0.0
  %654 = vmatpush.msra.mxu0 0.0
  %655 = vmatpush.msra.mxu0 0.0
  %656 = vmatpush.msra.mxu0 0.0
  %657 = vmatpush.msra.mxu0 0.0
  %v658 = vand.u32 %v526, 4294901760
  %v659 = vsub.f32 %v526, %v658
  %v660 = vand.u32 %v659, 4294901760
  %661 = vmatpush.msra.mxu0 %v660
  %v662 = vand.u32 %v522, 4294901760
  %v663 = vsub.f32 %v522, %v662
  %v664 = vand.u32 %v663, 4294901760
  %665 = vmatpush.msra.mxu0 %v664
  %v666 = vand.u32 %v533, 4294901760
  %667 = vmatmul.f32.gmra.mxu0 %v666
  %v668 = vpop.f32.mrf.mxu0
  %v669 = vadd.f32 %v642, %v668
  %670 = vdwg.mxu0
  %671 = vmatpush.msra.mxu0 0.0
  %672 = vmatpush.msra.mxu0 0.0
  %673 = vmatpush.msra.mxu0 0.0
  %674 = vmatpush.msra.mxu0 0.0
  %675 = vmatpush.msra.mxu0 0.0
  %676 = vmatpush.msra.mxu0 0.0
  %677 = vmatpush.msra.mxu0 0.0
  %678 = vmatpush.msra.mxu0 0.0
  %679 = vmatpush.msra.mxu0 0.0
  %680 = vmatpush.msra.mxu0 0.0
  %681 = vmatpush.msra.mxu0 0.0
  %682 = vmatpush.msra.mxu0 0.0
  %683 = vmatpush.msra.mxu0 0.0
  %684 = vmatpush.msra.mxu0 0.0
  %v685 = vand.u32 %v526, 4294901760
  %686 = vmatpush.msra.mxu0 %v685
  %v687 = vand.u32 %v522, 4294901760
  %688 = vmatpush.msra.mxu0 %v687
  %v689 = vand.u32 %v533, 4294901760
  %690 = vmatmul.f32.gmra.mxu0 %v689
  %v691 = vpop.f32.mrf.mxu0
  %v692 = vadd.f32 %v669, %v691
  %693 = vdwg.mxu0
  %694 = vmatpush.msra.mxu0 0.0
  %695 = vmatpush.msra.mxu0 0.0
  %696 = vmatpush.msra.mxu0 0.0
  %697 = vmatpush.msra.mxu0 0.0
  %698 = vmatpush.msra.mxu0 0.0
  %699 = vmatpush.msra.mxu0 0.0
  %700 = vmatpush.msra.mxu0 0.0
  %701 = vmatpush.msra.mxu0 0.0
  %702 = vmatpush.msra.mxu0 0.0
  %703 = vmatpush.msra.mxu0 0.0
  %704 = vmatpush.msra.mxu0 0.0
  %705 = vmatpush.msra.mxu0 0.0
  %706 = vmatpush.msra.mxu0 0.0
  %707 = vmatpush.msra.mxu0 0.0
  %v708 = vand.u32 %v527, 4294901760
  %709 = vmatpush.msra.mxu0 %v708
  %v710 = vand.u32 %v523, 4294901760
  %711 = vmatpush.msra.mxu0 %v710
  %v712 = vand.u32 %v533, 4294901760
  %v713 = vsub.f32 %v533, %v712
  %v714 = vand.u32 %v713, 4294901760
  %v715 = vsub.f32 %v713, %v714
  %v716 = vand.u32 %v715, 4294901760
  %717 = vmatmul.f32.gmra.mxu0 %v716
  %v718 = vpop.f32.mrf.mxu0
  %v719 = vadd.f32 0.0, %v718
  %720 = vdwg.mxu0
  %721 = vmatpush.msra.mxu0 0.0
  %722 = vmatpush.msra.mxu0 0.0
  %723 = vmatpush.msra.mxu0 0.0
  %724 = vmatpush.msra.mxu0 0.0
  %725 = vmatpush.msra.mxu0 0.0
  %726 = vmatpush.msra.mxu0 0.0
  %727 = vmatpush.msra.mxu0 0.0
  %728 = vmatpush.msra.mxu0 0.0
  %729 = vmatpush.msra.mxu0 0.0
  %730 = vmatpush.msra.mxu0 0.0
  %731 = vmatpush.msra.mxu0 0.0
  %732 = vmatpush.msra.mxu0 0.0
  %733 = vmatpush.msra.mxu0 0.0
  %734 = vmatpush.msra.mxu0 0.0
  %v735 = vand.u32 %v527, 4294901760
  %v736 = vsub.f32 %v527, %v735
  %v737 = vand.u32 %v736, 4294901760
  %v738 = vsub.f32 %v736, %v737
  %v739 = vand.u32 %v738, 4294901760
  %740 = vmatpush.msra.mxu0 %v739
  %v741 = vand.u32 %v523, 4294901760
  %v742 = vsub.f32 %v523, %v741
  %v743 = vand.u32 %v742, 4294901760
  %v744 = vsub.f32 %v742, %v743
  %v745 = vand.u32 %v744, 4294901760
  %746 = vmatpush.msra.mxu0 %v745
  %v747 = vand.u32 %v533, 4294901760
  %748 = vmatmul.f32.gmra.mxu0 %v747
  %v749 = vpop.f32.mrf.mxu0
  %v750 = vadd.f32 %v719, %v749
  %751 = vdwg.mxu0
  %752 = vmatpush.msra.mxu0 0.0
  %753 = vmatpush.msra.mxu0 0.0
  %754 = vmatpush.msra.mxu0 0.0
  %755 = vmatpush.msra.mxu0 0.0
  %756 = vmatpush.msra.mxu0 0.0
  %757 = vmatpush.msra.mxu0 0.0
  %758 = vmatpush.msra.mxu0 0.0
  %759 = vmatpush.msra.mxu0 0.0
  %760 = vmatpush.msra.mxu0 0.0
  %761 = vmatpush.msra.mxu0 0.0
  %762 = vmatpush.msra.mxu0 0.0
  %763 = vmatpush.msra.mxu0 0.0
  %764 = vmatpush.msra.mxu0 0.0
  %765 = vmatpush.msra.mxu0 0.0
  %v766 = vand.u32 %v527, 4294901760
  %v767 = vsub.f32 %v527, %v766
  %768 = vmatpush.msra.mxu0 %v767
  %v769 = vand.u32 %v523, 4294901760
  %v770 = vsub.f32 %v523, %v769
  %771 = vmatpush.msra.mxu0 %v770
  %v772 = vand.u32 %v533, 4294901760
  %v773 = vsub.f32 %v533, %v772
  %774 = vmatmul.f32.gmra.mxu0 %v773
  %v775 = vpop.f32.mrf.mxu0
  %v776 = vadd.f32 %v750, %v775
  %777 = vdwg.mxu0
  %778 = vmatpush.msra.mxu0 0.0
  %779 = vmatpush.msra.mxu0 0.0
  %780 = vmatpush.msra.mxu0 0.0
  %781 = vmatpush.msra.mxu0 0.0
  %782 = vmatpush.msra.mxu0 0.0
  %783 = vmatpush.msra.mxu0 0.0
  %784 = vmatpush.msra.mxu0 0.0
  %785 = vmatpush.msra.mxu0 0.0
  %786 = vmatpush.msra.mxu0 0.0
  %787 = vmatpush.msra.mxu0 0.0
  %788 = vmatpush.msra.mxu0 0.0
  %789 = vmatpush.msra.mxu0 0.0
  %790 = vmatpush.msra.mxu0 0.0
  %791 = vmatpush.msra.mxu0 0.0
  %v792 = vand.u32 %v527, 4294901760
  %793 = vmatpush.msra.mxu0 %v792
  %v794 = vand.u32 %v523, 4294901760
  %795 = vmatpush.msra.mxu0 %v794
  %v796 = vand.u32 %v533, 4294901760
  %v797 = vsub.f32 %v533, %v796
  %v798 = vand.u32 %v797, 4294901760
  %799 = vmatmul.f32.gmra.mxu0 %v798
  %v800 = vpop.f32.mrf.mxu0
  %v801 = vadd.f32 %v776, %v800
  %802 = vdwg.mxu0
  %803 = vmatpush.msra.mxu0 0.0
  %804 = vmatpush.msra.mxu0 0.0
  %805 = vmatpush.msra.mxu0 0.0
  %806 = vmatpush.msra.mxu0 0.0
  %807 = vmatpush.msra.mxu0 0.0
  %808 = vmatpush.msra.mxu0 0.0
  %809 = vmatpush.msra.mxu0 0.0
  %810 = vmatpush.msra.mxu0 0.0
  %811 = vmatpush.msra.mxu0 0.0
  %812 = vmatpush.msra.mxu0 0.0
  %813 = vmatpush.msra.mxu0 0.0
  %814 = vmatpush.msra.mxu0 0.0
  %815 = vmatpush.msra.mxu0 0.0
  %816 = vmatpush.msra.mxu0 0.0
  %v817 = vand.u32 %v527, 4294901760
  %v818 = vsub.f32 %v527, %v817
  %v819 = vand.u32 %v818, 4294901760
  %820 = vmatpush.msra.mxu0 %v819
  %v821 = vand.u32 %v523, 4294901760
  %v822 = vsub.f32 %v523, %v821
  %v823 = vand.u32 %v822, 4294901760
  %824 = vmatpush.msra.mxu0 %v823
  %v825 = vand.u32 %v533, 4294901760
  %826 = vmatmul.f32.gmra.mxu0 %v825
  %v827 = vpop.f32.mrf.mxu0
  %v828 = vadd.f32 %v801, %v827
  %829 = vdwg.mxu0
  %830 = vmatpush.msra.mxu0 0.0
  %831 = vmatpush.msra.mxu0 0.0
  %832 = vmatpush.msra.mxu0 0.0
  %833 = vmatpush.msra.mxu0 0.0
  %834 = vmatpush.msra.mxu0 0.0
  %835 = vmatpush.msra.mxu0 0.0
  %836 = vmatpush.msra.mxu0 0.0
  %837 = vmatpush.msra.mxu0 0.0
  %838 = vmatpush.msra.mxu0 0.0
  %839 = vmatpush.msra.mxu0 0.0
  %840 = vmatpush.msra.mxu0 0.0
  %841 = vmatpush.msra.mxu0 0.0
  %842 = vmatpush.msra.mxu0 0.0
  %843 = vmatpush.msra.mxu0 0.0
  %v844 = vand.u32 %v527, 4294901760
  %845 = vmatpush.msra.mxu0 %v844
  %v846 = vand.u32 %v523, 4294901760
  %847 = vmatpush.msra.mxu0 %v846
  %v848 = vand.u32 %v533, 4294901760
  %849 = vmatmul.f32.gmra.mxu0 %v848
  %v850 = vpop.f32.mrf.mxu0
  %v851 = vadd.f32 %v828, %v850
  %852 = vdwg.mxu0
  %853 = vmatpush.msra.mxu0 0.0
  %854 = vmatpush.msra.mxu0 0.0
  %855 = vmatpush.msra.mxu0 0.0
  %856 = vmatpush.msra.mxu0 0.0
  %857 = vmatpush.msra.mxu0 0.0
  %858 = vmatpush.msra.mxu0 0.0
  %859 = vmatpush.msra.mxu0 0.0
  %860 = vmatpush.msra.mxu0 0.0
  %861 = vmatpush.msra.mxu0 0.0
  %862 = vmatpush.msra.mxu0 0.0
  %863 = vmatpush.msra.mxu0 0.0
  %864 = vmatpush.msra.mxu0 0.0
  %865 = vmatpush.msra.mxu0 0.0
  %866 = vmatpush.msra.mxu0 0.0
  %v867 = vand.u32 %v528, 4294901760
  %868 = vmatpush.msra.mxu0 %v867
  %v869 = vand.u32 %v524, 4294901760
  %870 = vmatpush.msra.mxu0 %v869
  %v871 = vand.u32 %v533, 4294901760
  %v872 = vsub.f32 %v533, %v871
  %v873 = vand.u32 %v872, 4294901760
  %v874 = vsub.f32 %v872, %v873
  %v875 = vand.u32 %v874, 4294901760
  %876 = vmatmul.f32.gmra.mxu0 %v875
  %v877 = vpop.f32.mrf.mxu0
  %v878 = vadd.f32 0.0, %v877
  %879 = vdwg.mxu0
  %880 = vmatpush.msra.mxu0 0.0
  %881 = vmatpush.msra.mxu0 0.0
  %882 = vmatpush.msra.mxu0 0.0
  %883 = vmatpush.msra.mxu0 0.0
  %884 = vmatpush.msra.mxu0 0.0
  %885 = vmatpush.msra.mxu0 0.0
  %886 = vmatpush.msra.mxu0 0.0
  %887 = vmatpush.msra.mxu0 0.0
  %888 = vmatpush.msra.mxu0 0.0
  %889 = vmatpush.msra.mxu0 0.0
  %890 = vmatpush.msra.mxu0 0.0
  %891 = vmatpush.msra.mxu0 0.0
  %892 = vmatpush.msra.mxu0 0.0
  %893 = vmatpush.msra.mxu0 0.0
  %v894 = vand.u32 %v528, 4294901760
  %v895 = vsub.f32 %v528, %v894
  %v896 = vand.u32 %v895, 4294901760
  %v897 = vsub.f32 %v895, %v896
  %v898 = vand.u32 %v897, 4294901760
  %899 = vmatpush.msra.mxu0 %v898
  %v900 = vand.u32 %v524, 4294901760
  %v901 = vsub.f32 %v524, %v900
  %v902 = vand.u32 %v901, 4294901760
  %v903 = vsub.f32 %v901, %v902
  %v904 = vand.u32 %v903, 4294901760
  %905 = vmatpush.msra.mxu0 %v904
  %v906 = vand.u32 %v533, 4294901760
  %907 = vmatmul.f32.gmra.mxu0 %v906
  %v908 = vpop.f32.mrf.mxu0
  %v909 = vadd.f32 %v878, %v908
  %910 = vdwg.mxu0
  %911 = vmatpush.msra.mxu0 0.0
  %912 = vmatpush.msra.mxu0 0.0
  %913 = vmatpush.msra.mxu0 0.0
  %914 = vmatpush.msra.mxu0 0.0
  %915 = vmatpush.msra.mxu0 0.0
  %916 = vmatpush.msra.mxu0 0.0
  %917 = vmatpush.msra.mxu0 0.0
  %918 = vmatpush.msra.mxu0 0.0
  %919 = vmatpush.msra.mxu0 0.0
  %920 = vmatpush.msra.mxu0 0.0
  %921 = vmatpush.msra.mxu0 0.0
  %922 = vmatpush.msra.mxu0 0.0
  %923 = vmatpush.msra.mxu0 0.0
  %924 = vmatpush.msra.mxu0 0.0
  %v925 = vand.u32 %v528, 4294901760
  %v926 = vsub.f32 %v528, %v925
  %927 = vmatpush.msra.mxu0 %v926
  %v928 = vand.u32 %v524, 4294901760
  %v929 = vsub.f32 %v524, %v928
  %930 = vmatpush.msra.mxu0 %v929
  %v931 = vand.u32 %v533, 4294901760
  %v932 = vsub.f32 %v533, %v931
  %933 = vmatmul.f32.gmra.mxu0 %v932
  %v934 = vpop.f32.mrf.mxu0
  %v935 = vadd.f32 %v909, %v934
  %936 = vdwg.mxu0
  %937 = vmatpush.msra.mxu0 0.0
  %938 = vmatpush.msra.mxu0 0.0
  %939 = vmatpush.msra.mxu0 0.0
  %940 = vmatpush.msra.mxu0 0.0
  %941 = vmatpush.msra.mxu0 0.0
  %942 = vmatpush.msra.mxu0 0.0
  %943 = vmatpush.msra.mxu0 0.0
  %944 = vmatpush.msra.mxu0 0.0
  %945 = vmatpush.msra.mxu0 0.0
  %946 = vmatpush.msra.mxu0 0.0
  %947 = vmatpush.msra.mxu0 0.0
  %948 = vmatpush.msra.mxu0 0.0
  %949 = vmatpush.msra.mxu0 0.0
  %950 = vmatpush.msra.mxu0 0.0
  %v951 = vand.u32 %v528, 4294901760
  %952 = vmatpush.msra.mxu0 %v951
  %v953 = vand.u32 %v524, 4294901760
  %954 = vmatpush.msra.mxu0 %v953
  %v955 = vand.u32 %v533, 4294901760
  %v956 = vsub.f32 %v533, %v955
  %v957 = vand.u32 %v956, 4294901760
  %958 = vmatmul.f32.gmra.mxu0 %v957
  %v959 = vpop.f32.mrf.mxu0
  %v960 = vadd.f32 %v935, %v959
  %961 = vdwg.mxu0
  %962 = vmatpush.msra.mxu0 0.0
  %963 = vmatpush.msra.mxu0 0.0
  %964 = vmatpush.msra.mxu0 0.0
  %965 = vmatpush.msra.mxu0 0.0
  %966 = vmatpush.msra.mxu0 0.0
  %967 = vmatpush.msra.mxu0 0.0
  %968 = vmatpush.msra.mxu0 0.0
  %969 = vmatpush.msra.mxu0 0.0
  %970 = vmatpush.msra.mxu0 0.0
  %971 = vmatpush.msra.mxu0 0.0
  %972 = vmatpush.msra.mxu0 0.0
  %973 = vmatpush.msra.mxu0 0.0
  %974 = vmatpush.msra.mxu0 0.0
  %975 = vmatpush.msra.mxu0 0.0
  %v976 = vand.u32 %v528, 4294901760
  %v977 = vsub.f32 %v528, %v976
  %v978 = vand.u32 %v977, 4294901760
  %979 = vmatpush.msra.mxu0 %v978
  %v980 = vand.u32 %v524, 4294901760
  %v981 = vsub.f32 %v524, %v980
  %v982 = vand.u32 %v981, 4294901760
  %983 = vmatpush.msra.mxu0 %v982
  %v984 = vand.u32 %v533, 4294901760
  %985 = vmatmul.f32.gmra.mxu0 %v984
  %v986 = vpop.f32.mrf.mxu0
  %v987 = vadd.f32 %v960, %v986
  %988 = vdwg.mxu0
  %989 = vmatpush.msra.mxu0 0.0
  %990 = vmatpush.msra.mxu0 0.0
  %991 = vmatpush.msra.mxu0 0.0
  %992 = vmatpush.msra.mxu0 0.0
  %993 = vmatpush.msra.mxu0 0.0
  %994 = vmatpush.msra.mxu0 0.0
  %995 = vmatpush.msra.mxu0 0.0
  %996 = vmatpush.msra.mxu0 0.0
  %997 = vmatpush.msra.mxu0 0.0
  %998 = vmatpush.msra.mxu0 0.0
  %999 = vmatpush.msra.mxu0 0.0
  %1000 = vmatpush.msra.mxu0 0.0
  %1001 = vmatpush.msra.mxu0 0.0
  %1002 = vmatpush.msra.mxu0 0.0
  %v1003 = vand.u32 %v528, 4294901760
  %1004 = vmatpush.msra.mxu0 %v1003
  %v1005 = vand.u32 %v524, 4294901760
  %1006 = vmatpush.msra.mxu0 %v1005
  %v1007 = vand.u32 %v533, 4294901760
  %1008 = vmatmul.f32.gmra.mxu0 %v1007
  %v1009 = vpop.f32.mrf.mxu0
  %v1010 = vadd.f32 %v987, %v1009
  %1011 = vdwg.mxu0
  %1012 = vmatpush.msra.mxu0 0.0
  %1013 = vmatpush.msra.mxu0 0.0
  %1014 = vmatpush.msra.mxu0 0.0
  %1015 = vmatpush.msra.mxu0 0.0
  %1016 = vmatpush.msra.mxu0 0.0
  %1017 = vmatpush.msra.mxu0 0.0
  %1018 = vmatpush.msra.mxu0 0.0
  %1019 = vmatpush.msra.mxu0 0.0
  %1020 = vmatpush.msra.mxu0 0.0
  %1021 = vmatpush.msra.mxu0 0.0
  %1022 = vmatpush.msra.mxu0 0.0
  %1023 = vmatpush.msra.mxu0 0.0
  %1024 = vmatpush.msra.mxu0 0.0
  %1025 = vmatpush.msra.mxu0 0.0
  %v1026 = vand.u32 %v529, 4294901760
  %1027 = vmatpush.msra.mxu0 %v1026
  %v1028 = vand.u32 %v525, 4294901760
  %1029 = vmatpush.msra.mxu0 %v1028
  %v1030 = vand.u32 %v533, 4294901760
  %v1031 = vsub.f32 %v533, %v1030
  %v1032 = vand.u32 %v1031, 4294901760
  %v1033 = vsub.f32 %v1031, %v1032
  %v1034 = vand.u32 %v1033, 4294901760
  %1035 = vmatmul.f32.gmra.mxu0 %v1034
  %v1036 = vpop.f32.mrf.mxu0
  %v1037 = vadd.f32 0.0, %v1036
  %1038 = vdwg.mxu0
  %1039 = vmatpush.msra.mxu0 0.0
  %1040 = vmatpush.msra.mxu0 0.0
  %1041 = vmatpush.msra.mxu0 0.0
  %1042 = vmatpush.msra.mxu0 0.0
  %1043 = vmatpush.msra.mxu0 0.0
  %1044 = vmatpush.msra.mxu0 0.0
  %1045 = vmatpush.msra.mxu0 0.0
  %1046 = vmatpush.msra.mxu0 0.0
  %1047 = vmatpush.msra.mxu0 0.0
  %1048 = vmatpush.msra.mxu0 0.0
  %1049 = vmatpush.msra.mxu0 0.0
  %1050 = vmatpush.msra.mxu0 0.0
  %1051 = vmatpush.msra.mxu0 0.0
  %1052 = vmatpush.msra.mxu0 0.0
  %v1053 = vand.u32 %v529, 4294901760
  %v1054 = vsub.f32 %v529, %v1053
  %v1055 = vand.u32 %v1054, 4294901760
  %v1056 = vsub.f32 %v1054, %v1055
  %v1057 = vand.u32 %v1056, 4294901760
  %1058 = vmatpush.msra.mxu0 %v1057
  %v1059 = vand.u32 %v525, 4294901760
  %v1060 = vsub.f32 %v525, %v1059
  %v1061 = vand.u32 %v1060, 4294901760
  %v1062 = vsub.f32 %v1060, %v1061
  %v1063 = vand.u32 %v1062, 4294901760
  %1064 = vmatpush.msra.mxu0 %v1063
  %v1065 = vand.u32 %v533, 4294901760
  %1066 = vmatmul.f32.gmra.mxu0 %v1065
  %v1067 = vpop.f32.mrf.mxu0
  %v1068 = vadd.f32 %v1037, %v1067
  %1069 = vdwg.mxu0
  %1070 = vmatpush.msra.mxu0 0.0
  %1071 = vmatpush.msra.mxu0 0.0
  %1072 = vmatpush.msra.mxu0 0.0
  %1073 = vmatpush.msra.mxu0 0.0
  %1074 = vmatpush.msra.mxu0 0.0
  %1075 = vmatpush.msra.mxu0 0.0
  %1076 = vmatpush.msra.mxu0 0.0
  %1077 = vmatpush.msra.mxu0 0.0
  %1078 = vmatpush.msra.mxu0 0.0
  %1079 = vmatpush.msra.mxu0 0.0
  %1080 = vmatpush.msra.mxu0 0.0
  %1081 = vmatpush.msra.mxu0 0.0
  %1082 = vmatpush.msra.mxu0 0.0
  %1083 = vmatpush.msra.mxu0 0.0
  %v1084 = vand.u32 %v529, 4294901760
  %v1085 = vsub.f32 %v529, %v1084
  %1086 = vmatpush.msra.mxu0 %v1085
  %v1087 = vand.u32 %v525, 4294901760
  %v1088 = vsub.f32 %v525, %v1087
  %1089 = vmatpush.msra.mxu0 %v1088
  %v1090 = vand.u32 %v533, 4294901760
  %v1091 = vsub.f32 %v533, %v1090
  %1092 = vmatmul.f32.gmra.mxu0 %v1091
  %v1093 = vpop.f32.mrf.mxu0
  %v1094 = vadd.f32 %v1068, %v1093
  %1095 = vdwg.mxu0
  %1096 = vmatpush.msra.mxu0 0.0
  %1097 = vmatpush.msra.mxu0 0.0
  %1098 = vmatpush.msra.mxu0 0.0
  %1099 = vmatpush.msra.mxu0 0.0
  %1100 = vmatpush.msra.mxu0 0.0
  %1101 = vmatpush.msra.mxu0 0.0
  %1102 = vmatpush.msra.mxu0 0.0
  %1103 = vmatpush.msra.mxu0 0.0
  %1104 = vmatpush.msra.mxu0 0.0
  %1105 = vmatpush.msra.mxu0 0.0
  %1106 = vmatpush.msra.mxu0 0.0
  %1107 = vmatpush.msra.mxu0 0.0
  %1108 = vmatpush.msra.mxu0 0.0
  %1109 = vmatpush.msra.mxu0 0.0
  %v1110 = vand.u32 %v529, 4294901760
  %1111 = vmatpush.msra.mxu0 %v1110
  %v1112 = vand.u32 %v525, 4294901760
  %1113 = vmatpush.msra.mxu0 %v1112
  %v1114 = vand.u32 %v533, 4294901760
  %v1115 = vsub.f32 %v533, %v1114
  %v1116 = vand.u32 %v1115, 4294901760
  %1117 = vmatmul.f32.gmra.mxu0 %v1116
  %v1118 = vpop.f32.mrf.mxu0
  %v1119 = vadd.f32 %v1094, %v1118
  %1120 = vdwg.mxu0
  %1121 = vmatpush.msra.mxu0 0.0
  %1122 = vmatpush.msra.mxu0 0.0
  %1123 = vmatpush.msra.mxu0 0.0
  %1124 = vmatpush.msra.mxu0 0.0
  %1125 = vmatpush.msra.mxu0 0.0
  %1126 = vmatpush.msra.mxu0 0.0
  %1127 = vmatpush.msra.mxu0 0.0
  %1128 = vmatpush.msra.mxu0 0.0
  %1129 = vmatpush.msra.mxu0 0.0
  %1130 = vmatpush.msra.mxu0 0.0
  %1131 = vmatpush.msra.mxu0 0.0
  %1132 = vmatpush.msra.mxu0 0.0
  %1133 = vmatpush.msra.mxu0 0.0
  %1134 = vmatpush.msra.mxu0 0.0
  %v1135 = vand.u32 %v529, 4294901760
  %v1136 = vsub.f32 %v529, %v1135
  %v1137 = vand.u32 %v1136, 4294901760
  %1138 = vmatpush.msra.mxu0 %v1137
  %v1139 = vand.u32 %v525, 4294901760
  %v1140 = vsub.f32 %v525, %v1139
  %v1141 = vand.u32 %v1140, 4294901760
  %1142 = vmatpush.msra.mxu0 %v1141
  %v1143 = vand.u32 %v533, 4294901760
  %1144 = vmatmul.f32.gmra.mxu0 %v1143
  %v1145 = vpop.f32.mrf.mxu0
  %v1146 = vadd.f32 %v1119, %v1145
  %1147 = vdwg.mxu0
  %1148 = vmatpush.msra.mxu0 0.0
  %1149 = vmatpush.msra.mxu0 0.0
  %1150 = vmatpush.msra.mxu0 0.0
  %1151 = vmatpush.msra.mxu0 0.0
  %1152 = vmatpush.msra.mxu0 0.0
  %1153 = vmatpush.msra.mxu0 0.0
  %1154 = vmatpush.msra.mxu0 0.0
  %1155 = vmatpush.msra.mxu0 0.0
  %1156 = vmatpush.msra.mxu0 0.0
  %1157 = vmatpush.msra.mxu0 0.0
  %1158 = vmatpush.msra.mxu0 0.0
  %1159 = vmatpush.msra.mxu0 0.0
  %1160 = vmatpush.msra.mxu0 0.0
  %1161 = vmatpush.msra.mxu0 0.0
  %v1162 = vand.u32 %v529, 4294901760
  %1163 = vmatpush.msra.mxu0 %v1162
  %v1164 = vand.u32 %v525, 4294901760
  %1165 = vmatpush.msra.mxu0 %v1164
  %v1166 = vand.u32 %v533, 4294901760
  %1167 = vmatmul.f32.gmra.mxu0 %v1166
  %v1168 = vpop.f32.mrf.mxu0
  %v1169 = vadd.f32 %v1146, %v1168
  %1170 = vdwg.mxu0
  %1171 = vst [vmem:[%s3] sm:$0xff] %v692
  %1172 = vst [vmem:[%s3 + $0x8] sm:$0xff] %v851
  %1173 = vst [vmem:[%s3 + $0x10] sm:$0xff] %v1010
  %1174 = vst [vmem:[%s3 + $0x18] sm:$0xff] %v1169
  // Predicated region
  $region14: #{_forward.1} parent=0 // pred_check
    _
  $region15: #{_forward.1} parent=0 // pred_check_branch
    %1176 = sbr.rel (0) target = $region17
  $region16: #{_forward.1} parent=0 // pred_region
    _
  $region17: #{_forward.1} parent=0 // pred_fallthru
    _
  // Predicated region
  $region18: #{_forward.1} parent=0 // pred_check
    _
  $region19: #{_forward.1} parent=0 // pred_check_branch
    %1178 = sbr.rel (0) target = $region21
  $region20: #{_forward.1} parent=0 // pred_region
    _
  $region21: #{_forward.1} parent=0 // pred_fallthru
    _

</llo_original>
